<compile_context>
chip_gen: v5e
topology: v5e:2x2
jax: 0.10.0
libtpu: 0.0.40
codegen_flags: <defaults>
</compile_context>

<pallas_src>
import math
import jax
import jax.numpy as jnp
from jax.experimental import pallas as pl
from jax.experimental.pallas import tpu as pltpu

LANES = 128
_MAX_LANE_WIDTH = 4096                 # cap lane width of the 2D slab
_BUF_BUDGET_BYTES = 4 * 1024 * 1024    # ~4 MiB per pipeline buffer (4 live => ~16 MiB)
_VMEM_LIMIT_BYTES = 32 * 1024 * 1024   # safe on v5e/v6e/v7x


def _copy_kernel(x_ref, o_ref):
    # Identity copy of the current tile: `view` preserves flat element order.
    o_ref[...] = x_ref[...]


def _sublanes_for_dtype(dtype) -> int:
    itemsize = jnp.dtype(dtype).itemsize
    return {4: 8, 2: 16, 1: 32}.get(itemsize, 8)


def _resolve_shape(total: int, shape: tuple) -> tuple:
    """Resolve a torch.view-style shape (supports a single -1)."""
    shape = tuple(int(s) for s in shape)
    if -1 in shape:
        idx = shape.index(-1)
        known = 1
        for i, s in enumerate(shape):
            if i != idx:
                known *= s
        assert total % known == 0, "view shape incompatible with input size"
        shape = shape[:idx] + (total // known,) + shape[idx + 1:]
    assert math.prod(shape) == total, "view shape incompatible with input size"
    return shape


def _pick_width(total: int) -> int:
    """Largest multiple of 128 (<= cap) that divides `total`; 0 if none."""
    for w in range(_MAX_LANE_WIDTH, 0, -LANES):
        if total % w == 0:
            return w
    return 0


def _pick_tile_rows(rows: int, width: int, itemsize: int, sub: int) -> int:
    """Largest row-tile that fits the per-buffer VMEM budget.

    Prefers (a) the whole array in one block, else (b) a multiple of the
    sublane granularity that divides `rows` (full, unmasked blocks), else
    (c) a multiple of the sublane granularity (Pallas masks the tail block).
    """
    row_bytes = width * itemsize
    max_rows = max(1, _BUF_BUDGET_BYTES // row_bytes)
    if rows <= max_rows:
        return rows
    cand = max(sub, (max_rows // sub) * sub)
    t = cand
    for _ in range(64):  # short search for a divisor of `rows`
        if t < sub:
            break
        if rows % t == 0:
            return t
        t -= sub
    return cand


def _pallas_copy_2d(x2d: jax.Array) -> jax.Array:
    rows, width = x2d.shape
    itemsize = jnp.dtype(x2d.dtype).itemsize
    sub = _sublanes_for_dtype(x2d.dtype)
    tile_rows = _pick_tile_rows(rows, width, itemsize, sub)
    grid = (pl.cdiv(rows, tile_rows),)
    return pl.pallas_call(
        _copy_kernel,
        out_shape=jax.ShapeDtypeStruct((rows, width), x2d.dtype),
        grid=grid,
        in_specs=[pl.BlockSpec((tile_rows, width), lambda i: (i, 0))],
        out_specs=pl.BlockSpec((tile_rows, width), lambda i: (i, 0)),
        compiler_params=pltpu.CompilerParams(
            dimension_semantics=("parallel",),
            vmem_limit_bytes=_VMEM_LIMIT_BYTES,
        ),
    )(x2d)


class View:
    """JAX/Pallas equivalent of the PyTorch View module."""

    def __init__(self, shape: tuple, contiguous: bool = False,
                 use_pallas_copy: bool = False):
        self.shape = shape
        # JAX arrays are always "contiguous" values; the flag is a no-op.
        self.contiguous = contiguous
        # view/reshape is metadata-only in XLA; the Pallas copy kernel is kept
        # only behind this flag (per perf guidance).
        self.use_pallas_copy = use_pallas_copy

    def __call__(self, x: jax.Array) -> jax.Array:
        total = math.prod(x.shape)
        out_shape = _resolve_shape(total, self.shape)

        if not self.use_pallas_copy:
            # Fast path: zero HBM traffic.
            return jnp.reshape(x, out_shape)

        width = _pick_width(total)
        if width == 0:
            # Total not a multiple of 128: a kernel copy would require padding
            # (extra HBM traffic), so use the metadata-only reshape instead.
            return jnp.reshape(x, out_shape)

        rows = total // width
        x2d = jnp.reshape(x, (rows, width))   # metadata-only, no pad/copy
        out2d = _pallas_copy_2d(x2d)
        return jnp.reshape(out2d, out_shape)  # metadata-only


if __name__ == "__main__":
    key = jax.random.PRNGKey(0)
    # Small NCHW-like input, consistent with the module's typical use in a
    # conformer conv-subsampling stack: (batch, channels, H, W) = (2, 4, 16, 16)
    x = jax.random.normal(key, (2, 4, 16, 16), dtype=jnp.float32)

    ref = jnp.reshape(x, (2, 4, 256))

    # Pallas kernel path: View (2, 4, 16, 16) -> (2, 4, -1) == (2, 4, 256)
    view_kernel = View(shape=(2, 4, -1), contiguous=True, use_pallas_copy=True)
    y = jax.block_until_ready(view_kernel(x))
    assert y.shape == (2, 4, 256), y.shape
    assert y.dtype == x.dtype
    assert bool(jnp.all(y == ref))

    # Default (recommended) metadata-only path.
    y2 = jax.block_until_ready(View(shape=(2, 4, -1), contiguous=True)(x))
    assert y2.shape == (2, 4, 256)
    assert bool(jnp.all(y2 == ref))

    print("KERNEL_OK")
</pallas_src>

<mosaic_0001>
module attributes {stable_mosaic.version = 11 : i64} {
  func.func @_copy_kernel(%arg0: i32, %arg1: memref<1x2048xf32, #tpu.memory_space<vmem>>, %arg2: memref<1x2048xf32, #tpu.memory_space<vmem>>) attributes {dimension_semantics = [#tpu.dimension_semantics<parallel>], iteration_bounds = array<i64: 1>, scalar_prefetch = 0 : i64, scratch_operands = 0 : i64, tpu.core_type = #tpu.core_type<tc>, window_params = [{transform_indices = @transform_0, window_bounds = array<i64: 1, 2048>}, {transform_indices = @transform_1, window_bounds = array<i64: 1, 2048>}]} {
    %c0 = arith.constant 0 : index
    %c0_0 = arith.constant 0 : index
    %0 = vector.load %arg1[%c0, %c0_0] : memref<1x2048xf32, #tpu.memory_space<vmem>>, vector<1x2048xf32>
    %c0_1 = arith.constant 0 : index
    %c0_2 = arith.constant 0 : index
    %1 = vector.load %arg2[%c0_1, %c0_2] : memref<1x2048xf32, #tpu.memory_space<vmem>>, vector<1x2048xf32>
    tpu.vector_store %arg2[%c0_1, %c0_2], %0 {strides = array<i32>} : memref<1x2048xf32, #tpu.memory_space<vmem>>, vector<1x2048xf32>,
    return
  }
  func.func @transform_0(%arg0: i32) -> (i32, i32) {
    %c0_i32 = arith.constant 0 : i32
    %c0_i32_0 = arith.constant 0 : i32
    return %arg0, %c0_i32 : i32, i32
  }
  func.func @transform_1(%arg0: i32) -> (i32, i32) {
    %c0_i32 = arith.constant 0 : i32
    %c0_i32_0 = arith.constant 0 : i32
    return %arg0, %c0_i32 : i32, i32
  }
}

</mosaic_0001>

<llo_original>
// kernel: tpu_custom_call.1
$region0: #{tpu_custom_call.1}
  #allocation0 [shape = 'u32[]', space=smem, size = 0x4, offset = 0x4, fixed_abs, tag = 'smem constant byte address 0x4 - core index']
  #allocation1 [shape = 'u32[72,128]{1,0:T(1,128)}', space=vmem, size = 0x9000, scoped, tag = 'internal scratch']
  %s0 = inlined_call_operand.hbm [shape: f32[1,2048], index: 0, kind: input, shape index: {}]
  %s1 = inlined_call_operand.hbm [shape: f32[1,2048], index: 1, kind: output, shape index: {}]
  %s2 = sld [smem:[#allocation0]]
  $region18: #{tpu_custom_call.1} parent=0
    _
  %s4 = ssub.s32 1, %s2
  %s5 = scalar_select 0, %s4, %s2
  $region1: #{tpu_custom_call.1} parent=0
    #allocation2 [shape = 'u8[8192]{0}', space=vmem, size = 0x2000, scoped, tag = 'input window, operand 0, single buffered']
    #allocation3 [shape = 's32[1]{0}', space=sflag, size = 0x4, scoped, tag = 'scoped memory for tpu_custom_call.1']
    #allocation4 [shape = 's32[1]{0}', space=sflag, size = 0x4, scoped, tag = 'scoped memory for tpu_custom_call.1']
    #allocation5 [shape = 'u8[8192]{0}', space=vmem, size = 0x2000, scoped, tag = 'output window, operand 0, single buffered']
    %6 = vsyncpa [#allocation3], 0
    %7 = vsyncpa [#allocation4], 0
    // Predicated region
    $region2: #{tpu_custom_call.1} parent=1 // pred_check
      _
    $region3: #{tpu_custom_call.1} parent=1 // pred_check_branch
      %9 = sbr.rel (0) target = $region5
    $region4: #{tpu_custom_call.1} parent=1 // pred_region
      %11 = vsyncadd [#allocation3], 0
      %s13 = sshll.u32 %s0, 4
      %s14 = int_to_ptr.hbm [resolvable:$true] %s13
      %s15 = sshll.u32 [#allocation2], 4
      %s16 = int_to_ptr.vmem [resolvable:$true] %s15
      %18 = dma.hbm_to_vmem [thread:$0]  %s14, 256, %s16, [#allocation3]
    $region5: #{tpu_custom_call.1} parent=1 // pred_fallthru
      _
    // Predicated region
    $region6: #{tpu_custom_call.1} parent=1 // pred_check
      _
    $region7: #{tpu_custom_call.1} parent=1 // pred_check_branch
      %20 = sbr.rel (0) target = $region9
    $region8: #{tpu_custom_call.1} parent=1 // pred_region
      %22 = dma.done [#allocation3], 256
    $region9: #{tpu_custom_call.1} parent=1 // pred_fallthru
      _
    %v23 = vld [vmem:[#allocation2] sm:$0xff]
    %v24 = vld [vmem:[#allocation2 + $0x8] sm:$0xff]
    %25 = vst [vmem:[#allocation5] sm:$0xff] %v23
    %26 = vst [vmem:[#allocation5 + $0x8] sm:$0xff] %v24
    // Predicated region
    $region10: #{tpu_custom_call.1} parent=1 // pred_check
      _
    $region11: #{tpu_custom_call.1} parent=1 // pred_check_branch
      %28 = sbr.rel (0) target = $region13
    $region12: #{tpu_custom_call.1} parent=1 // pred_region
      %30 = vsyncadd [#allocation4], 0
      %s32 = sshll.u32 [#allocation5], 4
      %s33 = int_to_ptr.vmem [resolvable:$true] %s32
      %s34 = sshll.u32 %s1, 4
      %s35 = int_to_ptr.hbm [resolvable:$true] %s34
      %37 = dma.vmem_to_hbm [thread:$0]  %s33, 256, %s35, [#allocation4]
    $region13: #{tpu_custom_call.1} parent=1 // pred_fallthru
      _
    // Predicated region
    $region14: #{tpu_custom_call.1} parent=1 // pred_check
      _
    $region15: #{tpu_custom_call.1} parent=1 // pred_check_branch
      %39 = sbr.rel (0) target = $region17
    $region16: #{tpu_custom_call.1} parent=1 // pred_region
      %41 = dma.done [#allocation4], 256
    $region17: #{tpu_custom_call.1} parent=1 // pred_fallthru
      _
    %42 = vsyncpa [#allocation3], 1
    %43 = vsyncpa [#allocation4], 1

</llo_original>
